<compile_context>
chip_gen: v5e
topology: v5e:2x2
jax: 0.10.0
libtpu: 0.0.40
codegen_flags: <defaults>
</compile_context>

<pallas_src>
import jax
import jax.numpy as jnp
from jax.experimental import pallas as pl
from jax.experimental.pallas import tpu as pltpu


def mlp_kernel(g_ref, w1_ref, b1_ref, w2_ref, b2_ref, o_ref):
    # Hidden layer: relu(g @ W1 + b1), f32 accumulation on the MXU.
    h = jnp.dot(g_ref[...], w1_ref[...], preferred_element_type=jnp.float32)
    h = jnp.maximum(h + b1_ref[...], 0.0)
    # Output layer: h @ W2 + b2 (out_dim is tiny; unpadded store is fine).
    o = jnp.dot(h.astype(w2_ref.dtype), w2_ref[...],
                preferred_element_type=jnp.float32)
    o_ref[...] = (o + b2_ref[...]).astype(o_ref.dtype)


def _round_up(x, m):
    return ((x + m - 1) // m) * m


def learning_module_forward(g, w1, b1, w2, b2, *, block_batch=2048,
                            use_bf16=False, core_parallel=False):
    B, in_dim = g.shape
    _, hid = w1.shape
    _, out_dim = w2.shape

    # Biases as (1, N) rows; biases/epilogue stay f32 regardless of use_bf16.
    b1_2d = b1.reshape(1, hid).astype(jnp.float32)
    b2_2d = b2.reshape(1, out_dim).astype(jnp.float32)

    if use_bf16:
        # Opt-in: halves the dominant HBM read (g). MXU takes bf16 natively on
        # all generations; accumulation stays f32 via preferred_element_type.
        g = g.astype(jnp.bfloat16)
        w1 = w1.astype(jnp.bfloat16)
        w2 = w2.astype(jnp.bfloat16)

    # Batch tiling: one sublane-aligned tile for small B, 2048-row tiles for
    # large B. Weights/biases stay VMEM-resident (constant index_map).
    Bt = min(block_batch, _round_up(B, 8))
    grid = (pl.cdiv(B, Bt),)

    g_item = 2 if use_bf16 else 4
    cost = pl.CostEstimate(
        flops=2 * B * (in_dim * hid + hid * out_dim),
        transcendentals=0,
        bytes_accessed=(g_item * (g.size + w1.size + w2.size)
                        + 4 * (b1_2d.size + b2_2d.size + B * out_dim)),
    )

    if core_parallel and grid[0] >= 2:
        # v7x: actually shard batch tiles across the two TensorCores (plain
        # "parallel" has near-zero codegen effect). Opt-in; default path below
        # is safe on single-TC v5e/v6e.
        semantics = (pltpu.CORE_PARALLEL,)
    else:
        semantics = ("parallel",)

    out = pl.pallas_call(
        mlp_kernel,
        out_shape=jax.ShapeDtypeStruct((B, out_dim), jnp.float32),
        grid_spec=pltpu.PrefetchScalarGridSpec(
            num_scalar_prefetch=0,
            grid=grid,
            in_specs=[
                # g: streamed along the batch grid axis.
                pl.BlockSpec((Bt, in_dim), lambda i: (i, 0)),
                # weights / biases: resident, same block every grid step.
                pl.BlockSpec((in_dim, hid), lambda i: (0, 0)),
                pl.BlockSpec((1, hid), lambda i: (0, 0)),
                pl.BlockSpec((hid, out_dim), lambda i: (0, 0)),
                pl.BlockSpec((1, out_dim), lambda i: (0, 0)),
            ],
            out_specs=pl.BlockSpec((Bt, out_dim), lambda i: (i, 0)),
        ),
        compiler_params=pltpu.CompilerParams(dimension_semantics=semantics),
        cost_estimate=cost,
    )(g, w1, b1_2d, w2, b2_2d)

    return out


if __name__ == "__main__":
    input_size = 66
    L_node = 50
    output_size = 2
    batch = 8

    key = jax.random.PRNGKey(0)
    k_g, k_w1, k_b1, k_w2, k_b2 = jax.random.split(key, 5)

    g = jax.random.normal(k_g, (batch, input_size), dtype=jnp.float32)
    L_W1 = jax.random.normal(k_w1, (input_size, L_node), dtype=jnp.float32)
    L_b1 = jax.random.normal(k_b1, (L_node,), dtype=jnp.float32)
    L_W2 = jax.random.normal(k_w2, (L_node, output_size), dtype=jnp.float32)
    L_b2 = jax.random.normal(k_b2, (output_size,), dtype=jnp.float32)

    # jit the wrapper so trace-time prep (reshapes, casts) is hoisted/fused
    # instead of re-issued as separate XLA ops per call.
    fwd = jax.jit(learning_module_forward)

    out = fwd(g, L_W1, L_b1, L_W2, L_b2)
    out = jax.block_until_ready(out)

    # Pure-JAX reference check.
    ref = jnp.maximum(g @ L_W1 + L_b1, 0.0) @ L_W2 + L_b2
    assert out.shape == (batch, output_size)
    assert jnp.allclose(out, ref, atol=1e-4, rtol=1e-4)

    print("KERNEL_OK")
</pallas_src>

<mosaic_0001>
module attributes {stable_mosaic.version = 11 : i64} {
  func.func @mlp_kernel(%arg0: i32, %arg1: memref<8x66xf32, #tpu.memory_space<vmem>>, %arg2: memref<66x50xf32, #tpu.memory_space<vmem>>, %arg3: memref<1x50xf32, #tpu.memory_space<vmem>>, %arg4: memref<50x2xf32, #tpu.memory_space<vmem>>, %arg5: memref<1x2xf32, #tpu.memory_space<vmem>>, %arg6: memref<8x2xf32, #tpu.memory_space<vmem>>) attributes {dimension_semantics = [#tpu.dimension_semantics<parallel>], iteration_bounds = array<i64: 1>, scalar_prefetch = 0 : i64, scratch_operands = 0 : i64, tpu.core_type = #tpu.core_type<tc>, window_params = [{transform_indices = @transform_0, window_bounds = array<i64: 8, 66>}, {pipeline_mode = #tpu.pipeline_mode<synchronous>, transform_indices = @transform_1, window_bounds = array<i64: 66, 50>}, {pipeline_mode = #tpu.pipeline_mode<synchronous>, transform_indices = @transform_2, window_bounds = array<i64: 1, 50>}, {pipeline_mode = #tpu.pipeline_mode<synchronous>, transform_indices = @transform_3, window_bounds = array<i64: 50, 2>}, {pipeline_mode = #tpu.pipeline_mode<synchronous>, transform_indices = @transform_4, window_bounds = array<i64: 1, 2>}, {transform_indices = @transform_5, window_bounds = array<i64: 8, 2>}]} {
    %c0 = arith.constant 0 : index
    %c0_0 = arith.constant 0 : index
    %0 = vector.load %arg1[%c0, %c0_0] : memref<8x66xf32, #tpu.memory_space<vmem>>, vector<8x66xf32>
    %c0_1 = arith.constant 0 : index
    %c0_2 = arith.constant 0 : index
    %1 = vector.load %arg2[%c0_1, %c0_2] : memref<66x50xf32, #tpu.memory_space<vmem>>, vector<66x50xf32>
    %cst = arith.constant dense<0.000000e+00> : vector<8x50xf32>
    %2 = tpu.matmul %0, %1, %cst {dimension_numbers = #tpu.dot_dimension_numbers<[1], [0], [0], [1], [0, 0, 1, 1], [], []>} : vector<8x66xf32>, vector<66x50xf32>, vector<8x50xf32> -> vector<8x50xf32>
    %c0_3 = arith.constant 0 : index
    %c0_4 = arith.constant 0 : index
    %3 = vector.load %arg3[%c0_3, %c0_4] : memref<1x50xf32, #tpu.memory_space<vmem>>, vector<1x50xf32>
    %4 = vector.broadcast %3 : vector<1x50xf32> to vector<8x50xf32>
    %5 = arith.addf %2, %4 : vector<8x50xf32>
    %cst_5 = arith.constant 0.000000e+00 : f32
    %6 = vector.broadcast %cst_5 : f32 to vector<8x50xf32>
    %7 = arith.maximumf %5, %6 : vector<8x50xf32>
    %c0_6 = arith.constant 0 : index
    %c0_7 = arith.constant 0 : index
    %8 = vector.load %arg4[%c0_6, %c0_7] : memref<50x2xf32, #tpu.memory_space<vmem>>, vector<50x2xf32>
    %cst_8 = arith.constant dense<0.000000e+00> : vector<8x2xf32>
    %9 = tpu.matmul %7, %8, %cst_8 {dimension_numbers = #tpu.dot_dimension_numbers<[1], [0], [0], [1], [0, 0, 1, 1], [], []>} : vector<8x50xf32>, vector<50x2xf32>, vector<8x2xf32> -> vector<8x2xf32>
    %c0_9 = arith.constant 0 : index
    %c0_10 = arith.constant 0 : index
    %10 = vector.load %arg5[%c0_9, %c0_10] : memref<1x2xf32, #tpu.memory_space<vmem>>, vector<1x2xf32>
    %11 = vector.broadcast %10 : vector<1x2xf32> to vector<8x2xf32>
    %12 = arith.addf %9, %11 : vector<8x2xf32>
    %c0_11 = arith.constant 0 : index
    %c0_12 = arith.constant 0 : index
    %13 = vector.load %arg6[%c0_11, %c0_12] : memref<8x2xf32, #tpu.memory_space<vmem>>, vector<8x2xf32>
    tpu.vector_store %arg6[%c0_11, %c0_12], %12 {strides = array<i32>} : memref<8x2xf32, #tpu.memory_space<vmem>>, vector<8x2xf32>,
    return
  }
  func.func @transform_0(%arg0: i32) -> (i32, i32) {
    %c0_i32 = arith.constant 0 : i32
    %c0_i32_0 = arith.constant 0 : i32
    return %arg0, %c0_i32 : i32, i32
  }
  func.func @transform_1(%arg0: i32) -> (i32, i32) {
    %c0_i32 = arith.constant 0 : i32
    %c0_i32_0 = arith.constant 0 : i32
    %c0_i32_1 = arith.constant 0 : i32
    return %c0_i32, %c0_i32_0 : i32, i32
  }
  func.func @transform_2(%arg0: i32) -> (i32, i32) {
    %c0_i32 = arith.constant 0 : i32
    %c0_i32_0 = arith.constant 0 : i32
    %c0_i32_1 = arith.constant 0 : i32
    return %c0_i32, %c0_i32_0 : i32, i32
  }
  func.func @transform_3(%arg0: i32) -> (i32, i32) {
    %c0_i32 = arith.constant 0 : i32
    %c0_i32_0 = arith.constant 0 : i32
    %c0_i32_1 = arith.constant 0 : i32
    return %c0_i32, %c0_i32_0 : i32, i32
  }
  func.func @transform_4(%arg0: i32) -> (i32, i32) {
    %c0_i32 = arith.constant 0 : i32
    %c0_i32_0 = arith.constant 0 : i32
    %c0_i32_1 = arith.constant 0 : i32
    return %c0_i32, %c0_i32_0 : i32, i32
  }
  func.func @transform_5(%arg0: i32) -> (i32, i32) {
    %c0_i32 = arith.constant 0 : i32
    %c0_i32_0 = arith.constant 0 : i32
    return %arg0, %c0_i32 : i32, i32
  }
}

</mosaic_0001>

<llo_original>
// kernel: learning_module_forward.1
$region0: #{learning_module_forward.1}
  #allocation0 [shape = 'u32[]', space=smem, size = 0x4, offset = 0x4, fixed_abs, tag = 'smem constant byte address 0x4 - core index']
  #allocation1 [shape = 'u32[72,128]{1,0:T(1,128)}', space=vmem, size = 0x9000, scoped, tag = 'internal scratch']
  %s0 = inlined_call_operand.vmem [shape: f32[8,66], index: 0, kind: input, shape index: {}]
  %s1 = inlined_call_operand.vmem [shape: f32[66,50], index: 1, kind: input, shape index: {}]
  %s2 = inlined_call_operand.vmem [shape: f32[1,50], index: 2, kind: input, shape index: {}]
  %s3 = inlined_call_operand.vmem [shape: f32[50,2], index: 3, kind: input, shape index: {}]
  %s4 = inlined_call_operand.vmem [shape: f32[1,2], index: 4, kind: input, shape index: {}]
  %s5 = inlined_call_operand.vmem [shape: f32[8,2], index: 5, kind: output, shape index: {}]
  %s6 = sld [smem:[#allocation0]]
  $region30: #{learning_module_forward.1} parent=0
    _
  %s8 = ssub.s32 1, %s6
  %s9 = scalar_select 0, %s8, %s6
  // Predicated region
  $region2: #{learning_module_forward.1} parent=0 // pred_check
    _
  $region3: #{learning_module_forward.1} parent=0 // pred_check_branch
    %11 = sbr.rel (0) target = $region5
  $region4: #{learning_module_forward.1} parent=0 // pred_region
    _
  $region5: #{learning_module_forward.1} parent=0 // pred_fallthru
    _
  // Predicated region
  $region6: #{learning_module_forward.1} parent=0 // pred_check
    _
  $region7: #{learning_module_forward.1} parent=0 // pred_check_branch
    %13 = sbr.rel (0) target = $region9
  $region8: #{learning_module_forward.1} parent=0 // pred_region
    _
  $region9: #{learning_module_forward.1} parent=0 // pred_fallthru
    _
  // Predicated region
  $region10: #{learning_module_forward.1} parent=0 // pred_check
    _
  $region11: #{learning_module_forward.1} parent=0 // pred_check_branch
    %15 = sbr.rel (0) target = $region13
  $region12: #{learning_module_forward.1} parent=0 // pred_region
    _
  $region13: #{learning_module_forward.1} parent=0 // pred_fallthru
    _
  // Predicated region
  $region14: #{learning_module_forward.1} parent=0 // pred_check
    _
  $region15: #{learning_module_forward.1} parent=0 // pred_check_branch
    %17 = sbr.rel (0) target = $region17
  $region16: #{learning_module_forward.1} parent=0 // pred_region
    _
  $region17: #{learning_module_forward.1} parent=0 // pred_fallthru
    _
  // Predicated region
  $region18: #{learning_module_forward.1} parent=0 // pred_check
    _
  $region19: #{learning_module_forward.1} parent=0 // pred_check_branch
    %19 = sbr.rel (0) target = $region21
  $region20: #{learning_module_forward.1} parent=0 // pred_region
    _
  $region21: #{learning_module_forward.1} parent=0 // pred_fallthru
    _
  %v20 = vld [vmem:[%s0] sm:$0xff]
  %v21 = vld [vmem:[%s1] sm:$0xff]
  %v22 = vld [vmem:[%s1 + $0x8] sm:$0xff]
  %v23 = vld [vmem:[%s1 + $0x10] sm:$0xff]
  %v24 = vld [vmem:[%s1 + $0x18] sm:$0xff]
  %v25 = vld [vmem:[%s1 + $0x20] sm:$0xff]
  %v26 = vld [vmem:[%s1 + $0x28] sm:$0xff]
  %v27 = vld [vmem:[%s1 + $0x30] sm:$0xff]
  %v28 = vld [vmem:[%s1 + $0x38] sm:$0xff]
  %v29 = vld [vmem:[%s1 + $0x40] sm:$0x3]
  %v30 = vld [vmem:[%s2] sm:$0x1]
  %v32 = vperm.slane %v30, 0
  %vm34 = vcmask 539648
  %v36 = vsel %vm34, %v20, 0
  %vm38 = vcmask 1041408
  %v40 = vsel %vm38, %v29, 0
  %42 = vmatpush.msra.mxu0 0.0
  %43 = vmatpush.msra.mxu0 0.0
  %44 = vmatpush.msra.mxu0 0.0
  %45 = vmatpush.msra.mxu0 0.0
  %46 = vmatpush.msra.mxu0 0.0
  %47 = vmatpush.msra.mxu0 0.0
  %48 = vmatpush.msra.mxu0 0.0
  %49 = vmatpush.msra.mxu0 %v40
  %50 = vmatpush.msra.mxu0 %v28
  %51 = vmatpush.msra.mxu0 %v27
  %52 = vmatpush.msra.mxu0 %v26
  %53 = vmatpush.msra.mxu0 %v25
  %54 = vmatpush.msra.mxu0 %v24
  %55 = vmatpush.msra.mxu0 %v23
  %56 = vmatpush.msra.mxu0 %v22
  %57 = vmatpush.msra.mxu0 %v21
  %58 = vmatmul.f32.gmra.mxu0 %v36
  %v59 = vpop.f32.mrf.mxu0
  %v60 = vadd.f32 %v32, %v59
  %61 = vdwg.mxu0
  %v62 = vmax.f32 %v60, 0.0
  %v63 = vld [vmem:[%s3] sm:$0xff]
  %v64 = vld [vmem:[%s3 + $0x8] sm:$0xff]
  %v65 = vld [vmem:[%s3 + $0x10] sm:$0xff]
  %v66 = vld [vmem:[%s3 + $0x18] sm:$0xff]
  %v67 = vld [vmem:[%s3 + $0x20] sm:$0xff]
  %v68 = vld [vmem:[%s3 + $0x28] sm:$0xff]
  %v69 = vld [vmem:[%s3 + $0x30] sm:$0x3]
  %v70 = vld [vmem:[%s4] sm:$0x1]
  %v72 = vperm.slane %v70, 0
  %vm74 = vcmask 408576
  %v76 = vsel %vm74, %v62, 0
  %v79 = vsel %vm38, %v69, 0
  %81 = vmatpush.msra.mxu0 0.0
  %82 = vmatpush.msra.mxu0 0.0
  %83 = vmatpush.msra.mxu0 0.0
  %84 = vmatpush.msra.mxu0 0.0
  %85 = vmatpush.msra.mxu0 0.0
  %86 = vmatpush.msra.mxu0 0.0
  %87 = vmatpush.msra.mxu0 0.0
  %88 = vmatpush.msra.mxu0 0.0
  %89 = vmatpush.msra.mxu0 0.0
  %90 = vmatpush.msra.mxu0 %v79
  %91 = vmatpush.msra.mxu0 %v68
  %92 = vmatpush.msra.mxu0 %v67
  %93 = vmatpush.msra.mxu0 %v66
  %94 = vmatpush.msra.mxu0 %v65
  %95 = vmatpush.msra.mxu0 %v64
  %96 = vmatpush.msra.mxu0 %v63
  %97 = vmatmul.f32.gmra.mxu0 %v76
  %v98 = vpop.f32.mrf.mxu0
  %v99 = vadd.f32 %v72, %v98
  %100 = vdwg.mxu0
  %vm101 = vcmask 15360
  %102 = vst.msk [vmem:[%s5] sm:$0xff] %vm101, %v99
  // Predicated region
  $region22: #{learning_module_forward.1} parent=0 // pred_check
    _
  $region23: #{learning_module_forward.1} parent=0 // pred_check_branch
    %104 = sbr.rel (0) target = $region25
  $region24: #{learning_module_forward.1} parent=0 // pred_region
    _
  $region25: #{learning_module_forward.1} parent=0 // pred_fallthru
    _
  // Predicated region
  $region26: #{learning_module_forward.1} parent=0 // pred_check
    _
  $region27: #{learning_module_forward.1} parent=0 // pred_check_branch
    %106 = sbr.rel (0) target = $region29
  $region28: #{learning_module_forward.1} parent=0 // pred_region
    _
  $region29: #{learning_module_forward.1} parent=0 // pred_fallthru
    _

</llo_original>
